<compile_context>
chip_gen: v7x
topology: tpu7x:2x2x1
jax: 0.10.0
libtpu: 0.0.40
codegen_flags: <defaults>
</compile_context>

<pallas_src>
import functools
import numpy as np

import jax
import jax.numpy as jnp
from jax.experimental import pallas as pl
from jax.experimental.pallas import tpu as pltpu


# ---- synthetic cfg (mirrors cfg.* fields used by the module) -------------------
NUM_CLASSES = (5, 7)        # cfg.MODEL.NUM_CLASSES (e.g. [num_verbs, num_nouns])
NUM_ACTIONS = 3             # cfg.FORECASTING.NUM_ACTIONS_TO_PREDICT
HEAD_DIM_IN = 32            # MODEL_REGISTRY.get(cfg.FORECASTING.AGGREGATOR).out_dim(cfg)
HEAD_ACT = "softmax"        # cfg.MODEL.HEAD_ACT
TEST_NOACT = False          # cfg.TEST.NO_ACT
TOTAL_CLASSES = int(sum(NUM_CLASSES))


# ---- Pallas kernel --------------------------------------------------------------
def _multihead_kernel(x_ref, w_ref, b_ref, o_ref, *,
                      num_heads, classes_per_head, apply_softmax):
    # x_ref : (B, D)        shared feature for every head
    # w_ref : (D, K*C)      all heads' projection weights fused column-wise
    # b_ref : (1, K*C)      fused bias
    # o_ref : (B, K*C)      lane-contiguous output slab (head-major columns)
    x = x_ref[...]

    # Single fused MXU matmul for all heads/groups; f32 accumulation.
    logits = jnp.dot(x, w_ref[...], preferred_element_type=jnp.float32) + b_ref[...]

    if apply_softmax:
        # nn.Softmax(dim=4): independent softmax over each head's full
        # (concatenated verbs+nouns) class segment.  K is tiny and static, so
        # operate on static lane slices and reassemble once.
        C = classes_per_head
        segs = []
        for k in range(num_heads):
            s = logits[:, k * C:(k + 1) * C]                    # (B, C)
            m = jnp.max(s, axis=-1, keepdims=True)
            e = jnp.exp(s - m)
            d = jnp.sum(e, axis=-1, keepdims=True)
            segs.append(e * pl.reciprocal(d, approx=False))      # EUP reciprocal
        probs = jnp.concatenate(segs, axis=-1)                   # (B, K*C)
    else:
        probs = logits

    o_ref[...] = probs.astype(o_ref.dtype)                       # single store


def multi_head_decoder(x, w, b, *, num_classes=NUM_CLASSES, apply_softmax=True):
    """x: (B, D, 1, 1, 1) or (B, D); w: (K, D, sum(num_classes)); b: (K, 1, sum(num_classes)).

    Returns a tuple of arrays, one per class group: (B, K, num_classes_i).
    """
    B = x.shape[0]
    x2 = x.reshape(B, -1)                       # keep input dtype (no forced upcast)
    K, D, C = w.shape
    assert x2.shape[1] == D                     # guards the pool-as-identity assumption
    assert C == int(sum(num_classes))
    KC = K * C

    # Fuse all heads into one weight matrix / bias row (column index = k*C + c).
    w_fused = jnp.transpose(w, (1, 0, 2)).reshape(D, KC)          # (D, K*C)
    b_fused = b.reshape(1, KC)                                    # (1, K*C)

    itemsize = jnp.dtype(x2.dtype).itemsize
    cost = pl.CostEstimate(
        flops=int(2 * B * D * KC),
        transcendentals=int(B * KC),
        bytes_accessed=int((B * D + D * KC + KC + B * KC) * itemsize),
    )

    vmem = pl.BlockSpec(memory_space=pltpu.MemorySpace.VMEM)
    kernel = functools.partial(
        _multihead_kernel,
        num_heads=K,
        classes_per_head=C,
        apply_softmax=apply_softmax,
    )

    out_flat = pl.pallas_call(
        kernel,
        out_shape=jax.ShapeDtypeStruct((B, KC), x2.dtype),
        in_specs=[vmem, vmem, vmem],
        out_specs=vmem,
        cost_estimate=cost,
    )(x2, w_fused, b_fused)

    # Final layout plumbing (tiny, fused by XLA): (B, K*C) -> (B, K, C) -> groups.
    out3 = out_flat.reshape(B, K, C)
    split_idx = np.cumsum(num_classes)[:-1].tolist()
    return tuple(jnp.split(out3, split_idx, axis=-1))


# ---- deterministic parameter construction + run ----------------------------------
if __name__ == "__main__":
    key = jax.random.PRNGKey(0)
    kx, kw, kb = jax.random.split(key, 3)

    B = 2
    # input as produced upstream: (B, head_dim_in, 1, 1, 1)  (NCTHW)
    x = jax.random.normal(kx, (B, HEAD_DIM_IN, 1, 1, 1), dtype=jnp.float32)

    # nn.Linear(sum(dim_in)=D, n_total) per head; stored transposed as (K, D, C)
    bound = 1.0 / np.sqrt(HEAD_DIM_IN)
    w = jax.random.uniform(
        kw, (NUM_ACTIONS, HEAD_DIM_IN, TOTAL_CLASSES),
        minval=-bound, maxval=bound, dtype=jnp.float32)
    b = jax.random.uniform(
        kb, (NUM_ACTIONS, 1, TOTAL_CLASSES),
        minval=-bound, maxval=bound, dtype=jnp.float32)

    apply_softmax = (HEAD_ACT == "softmax") and (not TEST_NOACT)
    outs = multi_head_decoder(x, w, b, apply_softmax=apply_softmax)
    outs = jax.block_until_ready(outs)

    assert outs[0].shape == (B, NUM_ACTIONS, NUM_CLASSES[0])
    assert outs[1].shape == (B, NUM_ACTIONS, NUM_CLASSES[1])

    # reference check against plain JAX (matmul + bias + softmax over concat axis)
    x2 = x.reshape(B, -1)
    logits_ref = jnp.einsum("bd,kdc->bkc", x2, w) + b.reshape(1, NUM_ACTIONS, TOTAL_CLASSES)
    probs_ref = jax.nn.softmax(logits_ref, axis=-1) if apply_softmax else logits_ref
    ref_groups = jnp.split(probs_ref, [NUM_CLASSES[0]], axis=-1)
    assert bool(jnp.allclose(outs[0], ref_groups[0], atol=1e-5))
    assert bool(jnp.allclose(outs[1], ref_groups[1], atol=1e-5))

    # softmax spans the *concatenated* class dim -> per-(b,k) rows sum to 1 across groups
    total = sum(jnp.sum(o, axis=-1) for o in outs)
    assert bool(jnp.allclose(total, 1.0, atol=1e-5))

    print("KERNEL_OK")
</pallas_src>

<mosaic_0001>
module attributes {stable_mosaic.version = 11 : i64} {
  func.func @_multihead_kernel(%arg0: memref<2x32xf32, #tpu.memory_space<vmem>>, %arg1: memref<32x36xf32, #tpu.memory_space<vmem>>, %arg2: memref<1x36xf32, #tpu.memory_space<vmem>>, %arg3: memref<2x36xf32, #tpu.memory_space<vmem>>) attributes {dimension_semantics = [], scalar_prefetch = 0 : i64, scratch_operands = 0 : i64, tpu.core_type = #tpu.core_type<tc>} {
    %c0 = arith.constant 0 : index
    %c0_0 = arith.constant 0 : index
    %0 = vector.load %arg0[%c0, %c0_0] : memref<2x32xf32, #tpu.memory_space<vmem>>, vector<2x32xf32>
    %c0_1 = arith.constant 0 : index
    %c0_2 = arith.constant 0 : index
    %1 = vector.load %arg1[%c0_1, %c0_2] : memref<32x36xf32, #tpu.memory_space<vmem>>, vector<32x36xf32>
    %cst = arith.constant dense<0.000000e+00> : vector<2x36xf32>
    %2 = tpu.matmul %0, %1, %cst {dimension_numbers = #tpu.dot_dimension_numbers<[1], [0], [0], [1], [0, 0, 1, 1], [], []>} : vector<2x32xf32>, vector<32x36xf32>, vector<2x36xf32> -> vector<2x36xf32>
    %c0_3 = arith.constant 0 : index
    %c0_4 = arith.constant 0 : index
    %3 = vector.load %arg2[%c0_3, %c0_4] : memref<1x36xf32, #tpu.memory_space<vmem>>, vector<1x36xf32>
    %4 = vector.broadcast %3 : vector<1x36xf32> to vector<2x36xf32>
    %5 = arith.addf %2, %4 : vector<2x36xf32>
    %6 = vector.extract_strided_slice %5 {offsets = [0, 0], sizes = [2, 12], strides = [1, 1]} : vector<2x36xf32> to vector<2x12xf32>
    %cst_5 = arith.constant dense<0xFF800000> : vector<2xf32>
    %7 = vector.multi_reduction <maximumf>, %6, %cst_5 [1] : vector<2x12xf32> to vector<2xf32>
    %8 = vector.shape_cast %7 : vector<2xf32> to vector<2x1xf32>
    %9 = vector.broadcast %8 : vector<2x1xf32> to vector<2x12xf32>
    %10 = arith.subf %6, %9 : vector<2x12xf32>
    %11 = math.exp %10 : vector<2x12xf32>
    %cst_6 = arith.constant dense<0.000000e+00> : vector<2xf32>
    %12 = vector.multi_reduction <add>, %11, %cst_6 [1] : vector<2x12xf32> to vector<2xf32>
    %13 = vector.shape_cast %12 : vector<2xf32> to vector<2x1xf32>
    %14 = tpu.reciprocal %13 : vector<2x1xf32> -> vector<2x1xf32>
    %15 = vector.broadcast %14 : vector<2x1xf32> to vector<2x12xf32>
    %16 = arith.mulf %11, %15 : vector<2x12xf32>
    %17 = vector.extract_strided_slice %5 {offsets = [0, 12], sizes = [2, 12], strides = [1, 1]} : vector<2x36xf32> to vector<2x12xf32>
    %cst_7 = arith.constant dense<0xFF800000> : vector<2xf32>
    %18 = vector.multi_reduction <maximumf>, %17, %cst_7 [1] : vector<2x12xf32> to vector<2xf32>
    %19 = vector.shape_cast %18 : vector<2xf32> to vector<2x1xf32>
    %20 = vector.broadcast %19 : vector<2x1xf32> to vector<2x12xf32>
    %21 = arith.subf %17, %20 : vector<2x12xf32>
    %22 = math.exp %21 : vector<2x12xf32>
    %cst_8 = arith.constant dense<0.000000e+00> : vector<2xf32>
    %23 = vector.multi_reduction <add>, %22, %cst_8 [1] : vector<2x12xf32> to vector<2xf32>
    %24 = vector.shape_cast %23 : vector<2xf32> to vector<2x1xf32>
    %25 = tpu.reciprocal %24 : vector<2x1xf32> -> vector<2x1xf32>
    %26 = vector.broadcast %25 : vector<2x1xf32> to vector<2x12xf32>
    %27 = arith.mulf %22, %26 : vector<2x12xf32>
    %28 = vector.extract_strided_slice %5 {offsets = [0, 24], sizes = [2, 12], strides = [1, 1]} : vector<2x36xf32> to vector<2x12xf32>
    %cst_9 = arith.constant dense<0xFF800000> : vector<2xf32>
    %29 = vector.multi_reduction <maximumf>, %28, %cst_9 [1] : vector<2x12xf32> to vector<2xf32>
    %30 = vector.shape_cast %29 : vector<2xf32> to vector<2x1xf32>
    %31 = vector.broadcast %30 : vector<2x1xf32> to vector<2x12xf32>
    %32 = arith.subf %28, %31 : vector<2x12xf32>
    %33 = math.exp %32 : vector<2x12xf32>
    %cst_10 = arith.constant dense<0.000000e+00> : vector<2xf32>
    %34 = vector.multi_reduction <add>, %33, %cst_10 [1] : vector<2x12xf32> to vector<2xf32>
    %35 = vector.shape_cast %34 : vector<2xf32> to vector<2x1xf32>
    %36 = tpu.reciprocal %35 : vector<2x1xf32> -> vector<2x1xf32>
    %37 = vector.broadcast %36 : vector<2x1xf32> to vector<2x12xf32>
    %38 = arith.mulf %33, %37 : vector<2x12xf32>
    %39 = tpu.concatenate %16, %27, %38 in 1 : vector<2x12xf32>, vector<2x12xf32>, vector<2x12xf32> -> vector<2x36xf32>
    %c0_11 = arith.constant 0 : index
    %c0_12 = arith.constant 0 : index
    %40 = vector.load %arg3[%c0_11, %c0_12] : memref<2x36xf32, #tpu.memory_space<vmem>>, vector<2x36xf32>
    tpu.vector_store %arg3[%c0_11, %c0_12], %39 {strides = array<i32>} : memref<2x36xf32, #tpu.memory_space<vmem>>, vector<2x36xf32>,
    return
  }
}

</mosaic_0001>

<llo_original>
// kernel: tpu_custom_call.1
$region0: #{tpu_custom_call.1}
  #allocation0 [shape = 'u32[]', space=smem, size = 0x4, offset = 0x4, fixed_abs, tag = 'smem constant byte address 0x4 - core index']
  #allocation1 [shape = 'u32[144,128]{1,0:T(1,128)}', space=vmem, size = 0x12000, scoped, tag = 'internal scratch']
  %s0 = inlined_call_operand.hbm [shape: f32[2,32], index: 0, kind: input, shape index: {}]
  %s1 = inlined_call_operand.hbm [shape: f32[32,36], index: 1, kind: input, shape index: {}]
  %s2 = inlined_call_operand.vmem [shape: f32[1,36], index: 2, kind: input, shape index: {}]
  %s3 = inlined_call_operand.hbm [shape: f32[2,36], index: 3, kind: output, shape index: {}]
  %s4 = sld [smem:[#allocation0]]
  $region30: #{tpu_custom_call.1} parent=0
    _
  %s6 = ssub.s32 1, %s4
  %s7 = scalar_select 0, %s6, %s4
  $region1: #{tpu_custom_call.1} parent=0
    #allocation2 [shape = 'u8[1024]{0}', space=vmem, size = 0x400, scoped, tag = 'input window, operand 0, single buffered']
    #allocation3 [shape = 's32[1]{0}', space=sflag, size = 0x4, scoped, tag = 'scoped memory for tpu_custom_call.1']
    #allocation4 [shape = 's32[1]{0}', space=sflag, size = 0x4, scoped, tag = 'scoped memory for tpu_custom_call.1']
    #allocation5 [shape = 'u8[16384]{0}', space=vmem, size = 0x4000, scoped, tag = 'input window, operand 1, single buffered']
    #allocation6 [shape = 's32[1]{0}', space=sflag, size = 0x4, scoped, tag = 'scoped memory for tpu_custom_call.1']
    #allocation7 [shape = 'u8[1024]{0}', space=vmem, size = 0x400, scoped, tag = 'output window, operand 0, single buffered']
    %8 = vsyncpa [#allocation3], 0
    %9 = vsyncpa [#allocation6], 0
    %10 = vsyncpa [#allocation4], 0
    // Predicated region
    $region2: #{tpu_custom_call.1} parent=1 // pred_check
      _
    $region3: #{tpu_custom_call.1} parent=1 // pred_check_branch
      %12 = sbr.rel (0) target = $region5
    $region4: #{tpu_custom_call.1} parent=1 // pred_region
      %s14 = ssub.s32 32, 32
      %15 = vsyncadd [#allocation3], %s14
      %s17 = sshll.u32 [#allocation2], 4
      %s18 = int_to_ptr.vmem [resolvable:$true] %s17
      %20 = dma.hbm_to_vmem [thread:$0]  %s0, 32, %s18, [#allocation3]
    $region5: #{tpu_custom_call.1} parent=1 // pred_fallthru
      _
    // Predicated region
    $region6: #{tpu_custom_call.1} parent=1 // pred_check
      _
    $region7: #{tpu_custom_call.1} parent=1 // pred_check_branch
      %22 = sbr.rel (0) target = $region9
    $region8: #{tpu_custom_call.1} parent=1 // pred_region
      %s24 = ssub.s32 512, 512
      %25 = vsyncadd [#allocation6], %s24
      %s26 = sshll.u32 [#allocation5], 4
      %s27 = int_to_ptr.vmem [resolvable:$true] %s26
      %32 = dma.hbm_to_vmem [thread:$0]  %s1, 512, %s27, [#allocation6], 128, 128, 8
    $region9: #{tpu_custom_call.1} parent=1 // pred_fallthru
      _
    // Predicated region
    $region10: #{tpu_custom_call.1} parent=1 // pred_check
      _
    $region11: #{tpu_custom_call.1} parent=1 // pred_check_branch
      %34 = sbr.rel (0) target = $region13
    $region12: #{tpu_custom_call.1} parent=1 // pred_region
      _
    $region13: #{tpu_custom_call.1} parent=1 // pred_fallthru
      _
    // Predicated region
    $region14: #{tpu_custom_call.1} parent=1 // pred_check
      _
    $region15: #{tpu_custom_call.1} parent=1 // pred_check_branch
      %36 = sbr.rel (0) target = $region17
    $region16: #{tpu_custom_call.1} parent=1 // pred_region
      %37 = dma.done [#allocation3], 32
    $region17: #{tpu_custom_call.1} parent=1 // pred_fallthru
      _
    // Predicated region
    $region18: #{tpu_custom_call.1} parent=1 // pred_check
      _
    $region19: #{tpu_custom_call.1} parent=1 // pred_check_branch
      %39 = sbr.rel (0) target = $region21
    $region20: #{tpu_custom_call.1} parent=1 // pred_region
      %40 = dma.done [#allocation6], 512
    $region21: #{tpu_custom_call.1} parent=1 // pred_fallthru
      _
    %v41 = vld [vmem:[#allocation2] sm:$0x3]
    %v42 = vld [vmem:[#allocation5] sm:$0xff]
    %v43 = vld [vmem:[#allocation5 + $0x8] sm:$0xff]
    %v44 = vld [vmem:[#allocation5 + $0x10] sm:$0xff]
    %v45 = vld [vmem:[#allocation5 + $0x18] sm:$0xff]
    %v46 = vld [vmem:[%s2] sm:$0x1]
    %v48 = vlaneseq
    %v49 = vshrl.u32 %v48, 7
    %v50 = vsub.s32 0, %v49
    %v51 = vrot.slane %v46, %v50
    %vm53 = vcmask 261120
    %v55 = vsel %vm53, %v41, 0
    %57 = vmatprep.subr.mxu0 0.0
    %58 = vmatpush1.msra.mxu0 %v42
    %59 = vmatprep.subr.mxu0 0.0
    %60 = vmatpush1.msra.mxu0 %v43
    %61 = vmatprep.subr.mxu0 0.0
    %62 = vmatpush1.msra.mxu0 %v44
    %63 = vmatprep.subr.mxu0 0.0
    %64 = vmatpush1.msra.mxu0 %v45
    %65 = vmatprep.subr.mxu0 0.0
    %66 = vmatpush1.msra.mxu0 0.0
    %67 = vmatprep.subr.mxu0 0.0
    %68 = vmatpush1.msra.mxu0 0.0
    %69 = vmatprep.subr.mxu0 0.0
    %70 = vmatpush1.msra.mxu0 0.0
    %71 = vmatprep.subr.mxu0 0.0
    %72 = vmatpush1.msra.mxu0 0.0
    %73 = vmatprep.subr.mxu0 0.0
    %74 = vmatpush1.msra.mxu0 0.0
    %75 = vmatprep.subr.mxu0 0.0
    %76 = vmatpush1.msra.mxu0 0.0
    %77 = vmatprep.subr.mxu0 0.0
    %78 = vmatpush1.msra.mxu0 0.0
    %79 = vmatprep.subr.mxu0 0.0
    %80 = vmatpush1.msra.mxu0 0.0
    %81 = vmatprep.subr.mxu0 0.0
    %82 = vmatpush1.msra.mxu0 0.0
    %83 = vmatprep.subr.mxu0 0.0
    %84 = vmatpush1.msra.mxu0 0.0
    %85 = vmatprep.subr.mxu0 0.0
    %86 = vmatpush1.msra.mxu0 0.0
    %87 = vmatprep.subr.mxu0 0.0
    %88 = vmatpush1.msra.mxu0 0.0
    %89 = vmatprep.subr.mxu0 0.0
    %90 = vmatpush1.msra.mxu0 0.0
    %91 = vmatprep.subr.mxu0 0.0
    %92 = vmatpush1.msra.mxu0 0.0
    %93 = vmatprep.subr.mxu0 0.0
    %94 = vmatpush1.msra.mxu0 0.0
    %95 = vmatprep.subr.mxu0 0.0
    %96 = vmatpush1.msra.mxu0 0.0
    %97 = vmatprep.subr.mxu0 0.0
    %98 = vmatpush1.msra.mxu0 0.0
    %99 = vmatprep.subr.mxu0 0.0
    %100 = vmatpush1.msra.mxu0 0.0
    %101 = vmatprep.subr.mxu0 0.0
    %102 = vmatpush1.msra.mxu0 0.0
    %103 = vmatprep.subr.mxu0 0.0
    %104 = vmatpush1.msra.mxu0 0.0
    %105 = vmatprep.subr.mxu0 0.0
    %106 = vmatpush1.msra.mxu0 0.0
    %107 = vmatprep.subr.mxu0 0.0
    %108 = vmatpush1.msra.mxu0 0.0
    %109 = vmatprep.subr.mxu0 0.0
    %110 = vmatpush1.msra.mxu0 0.0
    %111 = vmatprep.subr.mxu0 0.0
    %112 = vmatpush1.msra.mxu0 0.0
    %113 = vmatprep.subr.mxu0 0.0
    %114 = vmatpush1.msra.mxu0 0.0
    %115 = vmatprep.subr.mxu0 0.0
    %116 = vmatpush1.msra.mxu0 0.0
    %117 = vmatprep.subr.mxu0 0.0
    %118 = vmatpush1.msra.mxu0 0.0
    %119 = vmatprep.subr.mxu0 0.0
    %120 = vmatpush1.msra.mxu0 0.0
    %121 = vmatprep.mubr.f32.mxu0 0.0
    %122 = vmatmul.mubr.f32.gmra.mrb[0].mxu0 %v55
    %v123 = vpop.f32.mrb[0].mxu0
    %v124 = vadd.f32 %v51, %v123
    %v125 = vpop.f32.mrb[0].mxu0
    %126 = vdwg.mxu0
    %vm127 = vcmask 91136
    %v128 = vsel %vm127, %v124, -inf
    %129 = vmax.xlane.f32.xlu0 %v128
    %v130 = vpop.xlane.xlu0 %129
    %v131 = vsub.f32 %v124, %v130
    %v132 = vmul.f32 %v131, 1.442695
    %v133 = vpow.pop %v132
    %v134 = vsel %vm127, %v133, 0.0
    %135 = vadd.xlane.f32.xlu0 %v134
    %v136 = vpop.xlane.xlu0 %135
    %v137 = vrcp.pop %v136
    %v138 = vmul.f32 %v133, %v137
    %vm139 = vcmask 189536
    %v140 = vsel %vm139, %v124, -inf
    %141 = vmax.xlane.f32.xlu0 %v140
    %v142 = vpop.xlane.xlu0 %141
    %v143 = vsub.f32 %v124, %v142
    %v144 = vmul.f32 %v143, 1.442695
    %v145 = vpow.pop %v144
    %147 = vrot.lane.b32.xlu0 %v145, 116
    %v148 = vpop.permute.xlu0 %147
    %v150 = vsel %vm127, %v148, 0.0
    %151 = vadd.xlane.f32.xlu0 %v150
    %v152 = vpop.xlane.xlu0 %151
    %v153 = vrcp.pop %v152
    %v154 = vmul.f32 %v145, %v153
    %vm155 = vcmask 287936
    %v156 = vsel %vm155, %v124, -inf
    %157 = vmax.xlane.f32.xlu0 %v156
    %v158 = vpop.xlane.xlu0 %157
    %v159 = vsub.f32 %v124, %v158
    %v160 = vmul.f32 %v159, 1.442695
    %v161 = vpow.pop %v160
    %163 = vrot.lane.b32.xlu0 %v161, 104
    %v164 = vpop.permute.xlu0 %163
    %v166 = vsel %vm127, %v164, 0.0
    %167 = vadd.xlane.f32.xlu0 %v166
    %v168 = vpop.xlane.xlu0 %167
    %v169 = vrcp.pop %v168
    %v170 = vmul.f32 %v161, %v169
    %vm171 = vcmask 97280
    %v172 = vsel %vm171, %v138, %v154
    %vm173 = vcmask 195584
    %v174 = vsel %vm173, %v172, %v170
    %vm175 = vcmask 287744
    %176 = vst.msk [vmem:[#allocation7] sm:$0x3] %vm175, %v174
    // Predicated region
    $region22: #{tpu_custom_call.1} parent=1 // pred_check
      _
    $region23: #{tpu_custom_call.1} parent=1 // pred_check_branch
      %178 = sbr.rel (0) target = $region25
    $region24: #{tpu_custom_call.1} parent=1 // pred_region
      %s180 = ssub.s32 32, 32
      %181 = vsyncadd [#allocation4], %s180
      %s183 = sshll.u32 [#allocation7], 4
      %s184 = int_to_ptr.vmem [resolvable:$true] %s183
      %186 = dma.vmem_to_hbm [thread:$0]  %s184, 32, %s3, [#allocation4]
    $region25: #{tpu_custom_call.1} parent=1 // pred_fallthru
      _
    // Predicated region
    $region26: #{tpu_custom_call.1} parent=1 // pred_check
      _
    $region27: #{tpu_custom_call.1} parent=1 // pred_check_branch
      %188 = sbr.rel (0) target = $region29
    $region28: #{tpu_custom_call.1} parent=1 // pred_region
      %189 = dma.done [#allocation4], 32
    $region29: #{tpu_custom_call.1} parent=1 // pred_fallthru
      _
    %190 = vsyncpa [#allocation3], 1
    %191 = vsyncpa [#allocation6], 1
    %192 = vsyncpa [#allocation4], 1

</llo_original>
